<compile_context>
chip_gen: v7x
topology: tpu7x:2x2x1
jax: 0.10.0
libtpu: 0.0.40
codegen_flags: <defaults>
</compile_context>

<pallas_src>
import functools
import math

import jax
import jax.numpy as jnp
from jax.experimental import pallas as pl
from jax.experimental.pallas import tpu as pltpu


# ----------------------------------------------------------------------------------------------
# Chunked GRU layer kernel (optionally with the final Linear fused in).
# PyTorch GRU gate order is [r, z, n]:
#   r_t = sigmoid(W_ir x + b_ir + W_hr h + b_hr)
#   z_t = sigmoid(W_iz x + b_iz + W_hz h + b_hz)
#   n_t = tanh  (W_in x + b_in + r_t * (W_hn h + b_hn))
#   h_t = (1 - z_t) * n_t + z_t * h_{t-1}
# gi (= x W_ih^T + b_ih + [b_hr, b_hz, 0]) is precomputed per chunk with one matmul.
# ----------------------------------------------------------------------------------------------
def _gru_chunk_kernel(fuse_fc, seq_len, bsz_pad, chunk, *refs):
    if fuse_fc:
        (x_ref, h0_ref, wih_ref, whh_ref, bcomb_ref, bhn_ref, fcw_ref, fcb_ref,
         dec_ref, hn_ref, gi_scr, hbuf, h_state) = refs
    else:
        (x_ref, h0_ref, wih_ref, whh_ref, bcomb_ref, bhn_ref,
         y_ref, hn_ref, gi_scr, h_state) = refs
        hbuf = y_ref  # write per-step hidden directly into the output block

    H = h_state.shape[-1]
    c = pl.program_id(0)

    @pl.when(c == 0)
    def _():
        h_state[...] = h0_ref[...].astype(jnp.float32)

    # Input projection for the whole time chunk — one MXU matmul, outside the recurrence.
    gi_scr[...] = (jnp.dot(x_ref[...], wih_ref[...], preferred_element_type=jnp.float32)
                   + bcomb_ref[...].astype(jnp.float32))

    whh = whh_ref[...]                      # (H, 3H), resident
    bhn = bhn_ref[...].astype(jnp.float32)  # (1, H)
    need_mask = (seq_len % chunk) != 0      # static (Python) — only emit masking if time is padded

    def step(t, h_prev):
        row = pl.multiple_of(t * bsz_pad, bsz_pad)
        gi = gi_scr[pl.ds(row, bsz_pad), :]                                      # (B, 3H) f32
        gh = jnp.dot(h_prev, whh, preferred_element_type=jnp.float32)            # (B, 3H) f32
        r = jax.nn.sigmoid(gi[:, :H] + gh[:, :H])
        zg = jax.nn.sigmoid(gi[:, H:2 * H] + gh[:, H:2 * H])
        n = jnp.tanh(gi[:, 2 * H:] + r * (gh[:, 2 * H:] + bhn))
        h_new = (1.0 - zg) * n + zg * h_prev
        if need_mask:
            m = ((c * chunk + t) < seq_len).astype(jnp.float32)
            h_new = m * h_new + (1.0 - m) * h_prev
        hbuf[pl.ds(row, bsz_pad), :] = h_new.astype(hbuf.dtype)
        return h_new

    h_last = jax.lax.fori_loop(0, chunk, step, h_state[...])
    h_state[...] = h_last

    if fuse_fc:
        # Fused decode_FC: one matmul over the whole chunk; decoded written directly.
        dec_ref[...] = (jnp.dot(hbuf[...], fcw_ref[...], preferred_element_type=jnp.float32)
                        + fcb_ref[...].astype(jnp.float32)).astype(dec_ref.dtype)

    @pl.when(c == pl.num_programs(0) - 1)
    def _():
        hn_ref[...] = h_last.astype(hn_ref.dtype)


def _gru_layer_chunked(x2d, h0, wihT, whhT, b_comb, b_hn, *, chunk, bsz_pad, seq_len,
                       out_dtype, fc_wT=None, fc_b=None):
    """x2d: (S_pad*B_pad, Din) time-major rows; h0: (B_pad, H)."""
    n_rows, Din = x2d.shape
    H = whhT.shape[0]
    rows_per_chunk = chunk * bsz_pad
    n_chunks = n_rows // rows_per_chunk
    fuse_fc = fc_wT is not None

    in_specs = [
        pl.BlockSpec((rows_per_chunk, Din), lambda c: (c, 0)),   # x chunk
        pl.BlockSpec((bsz_pad, H), lambda c: (0, 0)),            # h0 (resident)
        pl.BlockSpec((Din, 3 * H), lambda c: (0, 0)),            # W_ih^T (resident)
        pl.BlockSpec((H, 3 * H), lambda c: (0, 0)),              # W_hh^T (resident)
        pl.BlockSpec((1, 3 * H), lambda c: (0, 0)),              # folded bias
        pl.BlockSpec((1, H), lambda c: (0, 0)),                  # b_hn
    ]
    args = [x2d, h0, wihT, whhT, b_comb, b_hn]
    scratch = [pltpu.VMEM((rows_per_chunk, 3 * H), jnp.float32)]  # gi chunk

    if fuse_fc:
        out_dim = fc_wT.shape[1]
        in_specs += [pl.BlockSpec((H, out_dim), lambda c: (0, 0)),
                     pl.BlockSpec((1, out_dim), lambda c: (0, 0))]
        args += [fc_wT, fc_b]
        out_shape = (jax.ShapeDtypeStruct((n_rows, out_dim), out_dtype),
                     jax.ShapeDtypeStruct((bsz_pad, H), out_dtype))
        out_specs = [pl.BlockSpec((rows_per_chunk, out_dim), lambda c: (c, 0)),
                     pl.BlockSpec((bsz_pad, H), lambda c: (0, 0))]
        scratch += [pltpu.VMEM((rows_per_chunk, H), jnp.float32)]  # per-chunk hidden buffer
    else:
        out_shape = (jax.ShapeDtypeStruct((n_rows, H), out_dtype),
                     jax.ShapeDtypeStruct((bsz_pad, H), out_dtype))
        out_specs = [pl.BlockSpec((rows_per_chunk, H), lambda c: (c, 0)),
                     pl.BlockSpec((bsz_pad, H), lambda c: (0, 0))]

    scratch += [pltpu.VMEM((bsz_pad, H), jnp.float32)]             # carried hidden state

    kernel = functools.partial(_gru_chunk_kernel, fuse_fc, seq_len, bsz_pad, chunk)
    y, hn = pl.pallas_call(
        kernel,
        out_shape=out_shape,
        grid_spec=pltpu.PrefetchScalarGridSpec(
            num_scalar_prefetch=0,
            grid=(n_chunks,),
            in_specs=in_specs,
            out_specs=out_specs,
            scratch_shapes=scratch,
        ),
        compiler_params=pltpu.CompilerParams(
            dimension_semantics=("arbitrary",),          # recurrence: sequential time chunks
            vmem_limit_bytes=32 * 1024 * 1024,           # safe on v5e/v6e/v7x
        ),
    )(*args)
    return y, hn


# ----------------------------------------------------------------------------------------------
# Parameter preparation (done once, not per forward): transpose weights, fold biases.
# ----------------------------------------------------------------------------------------------
def prepare_params(params):
    H = params["gru"][0]["w_hh"].shape[1]
    prepared = {"gru": [], "H": H}
    for p in params["gru"]:
        b_comb = p["b_ih"] + jnp.concatenate(
            [p["b_hh"][:2 * H], jnp.zeros((H,), p["b_hh"].dtype)])
        prepared["gru"].append({
            "wihT": jnp.transpose(p["w_ih"]),            # (Din, 3H)
            "whhT": jnp.transpose(p["w_hh"]),            # (H, 3H)
            "b_comb": b_comb.reshape(1, 3 * H),
            "b_hn": p["b_hh"][2 * H:].reshape(1, H),
        })
    prepared["fc_wT"] = jnp.transpose(params["fc_w"])    # (H, out)
    prepared["fc_b"] = params["fc_b"].reshape(1, -1)
    return prepared


def _choose_time_chunk(S, B_pad, Din, H, out_dim, max_chunk=128, budget_bytes=12 * 2 ** 20):
    # Rough per-timestep VMEM: double-buffered x chunk + double-buffered y/dec chunk
    # + gi scratch + hidden buffer (all f32).
    per_t = 4 * B_pad * (2 * Din + 2 * max(H, out_dim) + 3 * H + H)
    return max(1, min(max_chunk, S, budget_bytes // max(per_t, 1)))


# ----------------------------------------------------------------------------------------------
# Full GRUDecoder forward.  z: (batch, seq, latent).  Returns (decoded, hidden).
# ----------------------------------------------------------------------------------------------
def gru_decoder_forward(z, prepared, hidden=None, *, time_chunk=128):
    B, S, Din0 = z.shape
    gru_params = prepared["gru"]
    L = len(gru_params)
    H = prepared["H"]
    out_dim = prepared["fc_wT"].shape[1]
    dtype = z.dtype

    if hidden is None:
        hidden = jnp.zeros((L, B, H), dtype)

    B_pad = max(8, -(-B // 8) * 8)
    T = _choose_time_chunk(S, B_pad, Din0, H, out_dim, max_chunk=time_chunk)
    n_chunks = -(-S // T)
    S_pad = n_chunks * T

    # (B, S, Din) -> time-major padded 2-D slab: row index = t * B_pad + b.
    x = jnp.transpose(z, (1, 0, 2))
    x = jnp.pad(x, ((0, S_pad - S), (0, B_pad - B), (0, 0)))
    x_cur = x.reshape(S_pad * B_pad, Din0)
    h_pad = jnp.pad(hidden, ((0, 0), (0, B_pad - B), (0, 0)))

    final_h = []
    dec2d = None
    for layer in range(L):
        p = gru_params[layer]
        last = layer == L - 1
        if last:
            dec2d, hn = _gru_layer_chunked(
                x_cur, h_pad[layer], p["wihT"], p["whhT"], p["b_comb"], p["b_hn"],
                chunk=T, bsz_pad=B_pad, seq_len=S, out_dtype=dtype,
                fc_wT=prepared["fc_wT"], fc_b=prepared["fc_b"])
        else:
            x_cur, hn = _gru_layer_chunked(
                x_cur, h_pad[layer], p["wihT"], p["whhT"], p["b_comb"], p["b_hn"],
                chunk=T, bsz_pad=B_pad, seq_len=S, out_dtype=dtype)
        final_h.append(hn[:B])

    hidden_out = jnp.stack(final_h, axis=0)                              # (L, B, H)
    decoded = dec2d.reshape(S_pad, B_pad, out_dim)[:S, :B]               # (S, B, out)
    decoded = jnp.transpose(decoded, (1, 0, 2))                          # (B, S, out)
    return decoded, hidden_out


# ----------------------------------------------------------------------------------------------
# Deterministic parameter init (same shapes / init range as torch.nn.GRU + nn.Linear)
# ----------------------------------------------------------------------------------------------
def init_params(key, latent_dimension, gru_stack_size, gru_neurons_num, out_dimension):
    H = gru_neurons_num
    k_gru = 1.0 / math.sqrt(H)
    params = {"gru": []}
    for layer in range(gru_stack_size):
        din = latent_dimension if layer == 0 else H
        key, k1, k2, k3, k4 = jax.random.split(key, 5)
        params["gru"].append({
            "w_ih": jax.random.uniform(k1, (3 * H, din), jnp.float32, -k_gru, k_gru),
            "w_hh": jax.random.uniform(k2, (3 * H, H), jnp.float32, -k_gru, k_gru),
            "b_ih": jax.random.uniform(k3, (3 * H,), jnp.float32, -k_gru, k_gru),
            "b_hh": jax.random.uniform(k4, (3 * H,), jnp.float32, -k_gru, k_gru),
        })
    k_fc = 1.0 / math.sqrt(H)
    key, k5, k6 = jax.random.split(key, 3)
    params["fc_w"] = jax.random.uniform(k5, (out_dimension, H), jnp.float32, -k_fc, k_fc)
    params["fc_b"] = jax.random.uniform(k6, (out_dimension,), jnp.float32, -k_fc, k_fc)
    return params


# ----------------------------------------------------------------------------------------------
# Pure-JAX reference (mirrors torch.nn.GRU math) for correctness checking
# ----------------------------------------------------------------------------------------------
def _ref_forward(z, params, hidden=None):
    B, S, _ = z.shape
    gru_params = params["gru"]
    L = len(gru_params)
    H = gru_params[0]["w_hh"].shape[1]
    if hidden is None:
        hidden = jnp.zeros((L, B, H), z.dtype)
    x = z
    hs = []
    for layer in range(L):
        p = gru_params[layer]
        h = hidden[layer]
        outs = []
        for t in range(S):
            xt = x[:, t, :]
            gi = xt @ p["w_ih"].T + p["b_ih"]
            gh = h @ p["w_hh"].T + p["b_hh"]
            r = jax.nn.sigmoid(gi[:, :H] + gh[:, :H])
            zg = jax.nn.sigmoid(gi[:, H:2 * H] + gh[:, H:2 * H])
            n = jnp.tanh(gi[:, 2 * H:] + r * gh[:, 2 * H:])
            h = (1.0 - zg) * n + zg * h
            outs.append(h)
        x = jnp.stack(outs, axis=1)
        hs.append(h)
    decoded = x @ params["fc_w"].T + params["fc_b"]
    return decoded, jnp.stack(hs, axis=0)


if __name__ == "__main__":
    # Small shapes consistent with the module's forward:
    batch, seq = 2, 8
    latent_dimension = 16
    gru_stack_size = 2
    gru_neurons_num = 32
    out_dimension = 16

    key = jax.random.PRNGKey(0)
    key, kz = jax.random.split(key)
    z = jax.random.normal(kz, (batch, seq, latent_dimension), jnp.float32)
    params = init_params(key, latent_dimension, gru_stack_size, gru_neurons_num, out_dimension)
    prepared = prepare_params(params)

    decoded, hidden = gru_decoder_forward(z, prepared)
    decoded = jax.block_until_ready(decoded)
    hidden = jax.block_until_ready(hidden)

    assert decoded.shape == (batch, seq, out_dimension)
    assert hidden.shape == (gru_stack_size, batch, gru_neurons_num)

    dec_ref, hid_ref = _ref_forward(z, params)
    assert jnp.allclose(decoded, dec_ref, atol=1e-4, rtol=1e-4)
    assert jnp.allclose(hidden, hid_ref, atol=1e-4, rtol=1e-4)

    print("KERNEL_OK")
</pallas_src>

<mosaic_0001>
module attributes {stable_mosaic.version = 11 : i64} {
  func.func @_gru_chunk_kernel(%arg0: i32, %arg1: memref<64x16xf32, #tpu.memory_space<vmem>>, %arg2: memref<8x32xf32, #tpu.memory_space<vmem>>, %arg3: memref<16x96xf32, #tpu.memory_space<vmem>>, %arg4: memref<32x96xf32, #tpu.memory_space<vmem>>, %arg5: memref<1x96xf32, #tpu.memory_space<vmem>>, %arg6: memref<1x32xf32, #tpu.memory_space<vmem>>, %arg7: memref<64x32xf32, #tpu.memory_space<vmem>>, %arg8: memref<8x32xf32, #tpu.memory_space<vmem>>, %arg9: memref<64x96xf32, #tpu.memory_space<vmem>>, %arg10: memref<8x32xf32, #tpu.memory_space<vmem>>) attributes {dimension_semantics = [#tpu.dimension_semantics<arbitrary>], iteration_bounds = array<i64: 1>, scalar_prefetch = 0 : i64, scratch_operands = 2 : i64, tpu.core_type = #tpu.core_type<tc>, window_params = [{transform_indices = @transform_0, window_bounds = array<i64: 64, 16>}, {pipeline_mode = #tpu.pipeline_mode<synchronous>, transform_indices = @transform_1, window_bounds = array<i64: 8, 32>}, {pipeline_mode = #tpu.pipeline_mode<synchronous>, transform_indices = @transform_2, window_bounds = array<i64: 16, 96>}, {pipeline_mode = #tpu.pipeline_mode<synchronous>, transform_indices = @transform_3, window_bounds = array<i64: 32, 96>}, {pipeline_mode = #tpu.pipeline_mode<synchronous>, transform_indices = @transform_4, window_bounds = array<i64: 1, 96>}, {pipeline_mode = #tpu.pipeline_mode<synchronous>, transform_indices = @transform_5, window_bounds = array<i64: 1, 32>}, {transform_indices = @transform_6, window_bounds = array<i64: 64, 32>}, {pipeline_mode = #tpu.pipeline_mode<synchronous>, transform_indices = @transform_7, window_bounds = array<i64: 8, 32>}]} {
    %c0_i32 = arith.constant 0 : i32
    %0 = arith.cmpi eq, %arg0, %c0_i32 : i32
    %1 = arith.extui %0 : i1 to i32
    %c0_i32_0 = arith.constant 0 : i32
    %2 = arith.cmpi ne, %1, %c0_i32_0 : i32
    scf.if %2 {
      %c0_20 = arith.constant 0 : index
      %c0_21 = arith.constant 0 : index
      %19 = vector.load %arg2[%c0_20, %c0_21] : memref<8x32xf32, #tpu.memory_space<vmem>>, vector<8x32xf32>
      %c0_22 = arith.constant 0 : index
      %c0_23 = arith.constant 0 : index
      %20 = vector.load %arg10[%c0_22, %c0_23] : memref<8x32xf32, #tpu.memory_space<vmem>>, vector<8x32xf32>
      tpu.vector_store %arg10[%c0_22, %c0_23], %19 {strides = array<i32>} : memref<8x32xf32, #tpu.memory_space<vmem>>, vector<8x32xf32>,
    } else {
    }
    %c0 = arith.constant 0 : index
    %c0_1 = arith.constant 0 : index
    %3 = vector.load %arg1[%c0, %c0_1] : memref<64x16xf32, #tpu.memory_space<vmem>>, vector<64x16xf32>
    %c0_2 = arith.constant 0 : index
    %c0_3 = arith.constant 0 : index
    %4 = vector.load %arg3[%c0_2, %c0_3] : memref<16x96xf32, #tpu.memory_space<vmem>>, vector<16x96xf32>
    %cst = arith.constant dense<0.000000e+00> : vector<64x96xf32>
    %5 = tpu.matmul %3, %4, %cst {dimension_numbers = #tpu.dot_dimension_numbers<[1], [0], [0], [1], [0, 0, 1, 1], [], []>} : vector<64x16xf32>, vector<16x96xf32>, vector<64x96xf32> -> vector<64x96xf32>
    %c0_4 = arith.constant 0 : index
    %c0_5 = arith.constant 0 : index
    %6 = vector.load %arg5[%c0_4, %c0_5] : memref<1x96xf32, #tpu.memory_space<vmem>>, vector<1x96xf32>
    %7 = vector.broadcast %6 : vector<1x96xf32> to vector<64x96xf32>
    %8 = arith.addf %5, %7 : vector<64x96xf32>
    %c0_6 = arith.constant 0 : index
    %c0_7 = arith.constant 0 : index
    %9 = vector.load %arg9[%c0_6, %c0_7] : memref<64x96xf32, #tpu.memory_space<vmem>>, vector<64x96xf32>
    tpu.vector_store %arg9[%c0_6, %c0_7], %8 {strides = array<i32>} : memref<64x96xf32, #tpu.memory_space<vmem>>, vector<64x96xf32>,
    %c0_8 = arith.constant 0 : index
    %c0_9 = arith.constant 0 : index
    %10 = vector.load %arg4[%c0_8, %c0_9] : memref<32x96xf32, #tpu.memory_space<vmem>>, vector<32x96xf32>
    %c0_10 = arith.constant 0 : index
    %c0_11 = arith.constant 0 : index
    %11 = vector.load %arg6[%c0_10, %c0_11] : memref<1x32xf32, #tpu.memory_space<vmem>>, vector<1x32xf32>
    %c0_12 = arith.constant 0 : index
    %c0_13 = arith.constant 0 : index
    %12 = vector.load %arg10[%c0_12, %c0_13] : memref<8x32xf32, #tpu.memory_space<vmem>>, vector<8x32xf32>
    %c0_i32_14 = arith.constant 0 : i32
    %c8_i32 = arith.constant 8 : i32
    %13 = arith.addi %c0_i32_14, %c8_i32 : i32
    %c1_i32 = arith.constant 1 : i32
    %14 = scf.for %arg11 = %c0_i32_14 to %13 step %c1_i32 iter_args(%arg12 = %12) -> (vector<8x32xf32>)  : i32 {
      %c8_i32_20 = arith.constant 8 : i32
      %19 = arith.muli %arg11, %c8_i32_20 : i32
      %20 = tpu.assume_multiple %19, 8 : i32
      %21 = arith.index_cast %20 : i32 to index
      %c0_21 = arith.constant 0 : index
      %22 = vector.load %arg9[%21, %c0_21] : memref<64x96xf32, #tpu.memory_space<vmem>>, vector<8x96xf32>
      %cst_22 = arith.constant dense<0.000000e+00> : vector<8x96xf32>
      %23 = tpu.matmul %arg12, %10, %cst_22 {dimension_numbers = #tpu.dot_dimension_numbers<[1], [0], [0], [1], [0, 0, 1, 1], [], []>} : vector<8x32xf32>, vector<32x96xf32>, vector<8x96xf32> -> vector<8x96xf32>
      %24 = vector.extract_strided_slice %22 {offsets = [0, 0], sizes = [8, 32], strides = [1, 1]} : vector<8x96xf32> to vector<8x32xf32>
      %25 = vector.extract_strided_slice %23 {offsets = [0, 0], sizes = [8, 32], strides = [1, 1]} : vector<8x96xf32> to vector<8x32xf32>
      %26 = arith.addf %24, %25 : vector<8x32xf32>
      %27 = arith.negf %26 : vector<8x32xf32>
      %28 = math.exp %27 : vector<8x32xf32>
      %cst_23 = arith.constant 1.000000e+00 : f32
      %29 = vector.broadcast %cst_23 : f32 to vector<8x32xf32>
      %30 = arith.addf %29, %28 : vector<8x32xf32>
      %31 = arith.divf %29, %30 : vector<8x32xf32>
      %32 = vector.extract_strided_slice %22 {offsets = [0, 32], sizes = [8, 32], strides = [1, 1]} : vector<8x96xf32> to vector<8x32xf32>
      %33 = vector.extract_strided_slice %23 {offsets = [0, 32], sizes = [8, 32], strides = [1, 1]} : vector<8x96xf32> to vector<8x32xf32>
      %34 = arith.addf %32, %33 : vector<8x32xf32>
      %35 = arith.negf %34 : vector<8x32xf32>
      %36 = math.exp %35 : vector<8x32xf32>
      %cst_24 = arith.constant 1.000000e+00 : f32
      %37 = vector.broadcast %cst_24 : f32 to vector<8x32xf32>
      %38 = arith.addf %37, %36 : vector<8x32xf32>
      %39 = arith.divf %37, %38 : vector<8x32xf32>
      %40 = vector.extract_strided_slice %22 {offsets = [0, 64], sizes = [8, 32], strides = [1, 1]} : vector<8x96xf32> to vector<8x32xf32>
      %41 = vector.extract_strided_slice %23 {offsets = [0, 64], sizes = [8, 32], strides = [1, 1]} : vector<8x96xf32> to vector<8x32xf32>
      %42 = vector.broadcast %11 : vector<1x32xf32> to vector<8x32xf32>
      %43 = arith.addf %41, %42 : vector<8x32xf32>
      %44 = arith.mulf %31, %43 : vector<8x32xf32>
      %45 = arith.addf %40, %44 : vector<8x32xf32>
      %46 = math.tanh %45 : vector<8x32xf32>
      %cst_25 = arith.constant 1.000000e+00 : f32
      %47 = vector.broadcast %cst_25 : f32 to vector<8x32xf32>
      %48 = arith.subf %47, %39 : vector<8x32xf32>
      %49 = arith.mulf %48, %46 : vector<8x32xf32>
      %50 = arith.mulf %39, %arg12 : vector<8x32xf32>
      %51 = arith.addf %49, %50 : vector<8x32xf32>
      %52 = arith.index_cast %20 : i32 to index
      %c0_26 = arith.constant 0 : index
      %53 = vector.load %arg7[%52, %c0_26] : memref<64x32xf32, #tpu.memory_space<vmem>>, vector<8x32xf32>
      tpu.vector_store %arg7[%52, %c0_26], %51 {strides = array<i32>} : memref<64x32xf32, #tpu.memory_space<vmem>>, vector<8x32xf32>,
      scf.yield %51 : vector<8x32xf32>
    }
    %c8_i32_15 = arith.constant 8 : i32
    %c0_16 = arith.constant 0 : index
    %c0_17 = arith.constant 0 : index
    %15 = vector.load %arg10[%c0_16, %c0_17] : memref<8x32xf32, #tpu.memory_space<vmem>>, vector<8x32xf32>
    tpu.vector_store %arg10[%c0_16, %c0_17], %14 {strides = array<i32>} : memref<8x32xf32, #tpu.memory_space<vmem>>, vector<8x32xf32>,
    %c0_i32_18 = arith.constant 0 : i32
    %16 = arith.cmpi eq, %arg0, %c0_i32_18 : i32
    %17 = arith.extui %16 : i1 to i32
    %c0_i32_19 = arith.constant 0 : i32
    %18 = arith.cmpi ne, %17, %c0_i32_19 : i32
    scf.if %18 {
      %c0_20 = arith.constant 0 : index
      %c0_21 = arith.constant 0 : index
      %19 = vector.load %arg8[%c0_20, %c0_21] : memref<8x32xf32, #tpu.memory_space<vmem>>, vector<8x32xf32>
      tpu.vector_store %arg8[%c0_20, %c0_21], %14 {strides = array<i32>} : memref<8x32xf32, #tpu.memory_space<vmem>>, vector<8x32xf32>,
    } else {
    }
    return
  }
  func.func @transform_0(%arg0: i32) -> (i32, i32) {
    %c0_i32 = arith.constant 0 : i32
    %c0_i32_0 = arith.constant 0 : i32
    return %arg0, %c0_i32 : i32, i32
  }
  func.func @transform_1(%arg0: i32) -> (i32, i32) {
    %c0_i32 = arith.constant 0 : i32
    %c0_i32_0 = arith.constant 0 : i32
    %c0_i32_1 = arith.constant 0 : i32
    return %c0_i32, %c0_i32_0 : i32, i32
  }
  func.func @transform_2(%arg0: i32) -> (i32, i32) {
    %c0_i32 = arith.constant 0 : i32
    %c0_i32_0 = arith.constant 0 : i32
    %c0_i32_1 = arith.constant 0 : i32
    return %c0_i32, %c0_i32_0 : i32, i32
  }
  func.func @transform_3(%arg0: i32) -> (i32, i32) {
    %c0_i32 = arith.constant 0 : i32
    %c0_i32_0 = arith.constant 0 : i32
    %c0_i32_1 = arith.constant 0 : i32
    return %c0_i32, %c0_i32_0 : i32, i32
  }
  func.func @transform_4(%arg0: i32) -> (i32, i32) {
    %c0_i32 = arith.constant 0 : i32
    %c0_i32_0 = arith.constant 0 : i32
    %c0_i32_1 = arith.constant 0 : i32
    return %c0_i32, %c0_i32_0 : i32, i32
  }
  func.func @transform_5(%arg0: i32) -> (i32, i32) {
    %c0_i32 = arith.constant 0 : i32
    %c0_i32_0 = arith.constant 0 : i32
    %c0_i32_1 = arith.constant 0 : i32
    return %c0_i32, %c0_i32_0 : i32, i32
  }
  func.func @transform_6(%arg0: i32) -> (i32, i32) {
    %c0_i32 = arith.constant 0 : i32
    %c0_i32_0 = arith.constant 0 : i32
    return %arg0, %c0_i32 : i32, i32
  }
  func.func @transform_7(%arg0: i32) -> (i32, i32) {
    %c0_i32 = arith.constant 0 : i32
    %c0_i32_0 = arith.constant 0 : i32
    %c0_i32_1 = arith.constant 0 : i32
    return %c0_i32, %c0_i32_0 : i32, i32
  }
}

</mosaic_0001>

<llo_original>
// kernel: tpu_custom_call.1
$region0: #{tpu_custom_call.1}
  #allocation0 [shape = 'u32[]', space=smem, size = 0x4, offset = 0x4, fixed_abs, tag = 'smem constant byte address 0x4 - core index']
  #allocation1 [shape = 'u32[144,128]{1,0:T(1,128)}', space=vmem, size = 0x12000, scoped, tag = 'internal scratch']
  #allocation2 [shape = 'f32[64,96]{1,0:T(8,128)}', space=vmem, size = 0x8000, scoped, tag = 'scratch operand']
  #allocation3 [shape = 'f32[8,32]{1,0:T(8,128)}', space=vmem, size = 0x1000, scoped, tag = 'scratch operand']
  %s0 = inlined_call_operand.vmem [shape: f32[64,16], index: 0, kind: input, shape index: {}]
  %s1 = inlined_call_operand.vmem [shape: f32[8,32], index: 1, kind: input, shape index: {}]
  %s2 = inlined_call_operand.vmem [shape: f32[16,96], index: 2, kind: input, shape index: {}]
  %s3 = inlined_call_operand.vmem [shape: f32[32,96], index: 3, kind: input, shape index: {}]
  %s4 = inlined_call_operand.vmem [shape: f32[1,96], index: 4, kind: input, shape index: {}]
  %s5 = inlined_call_operand.vmem [shape: f32[1,32], index: 5, kind: input, shape index: {}]
  %s6 = inlined_call_operand.vmem [shape: f32[64,32], index: 6, kind: output, shape index: {0}]
  %s7 = inlined_call_operand.hbm [shape: f32[8,32], index: 7, kind: output, shape index: {1}]
  %8 = xla_tuple %s6, %s7
  %s9 = sld [smem:[#allocation0]]
  $region57: #{tpu_custom_call.1} parent=0
    _
  %s11 = ssub.s32 1, %s9
  %s12 = scalar_select 0, %s11, %s9
  $region1: #{tpu_custom_call.1} parent=0
    #allocation4 [shape = 'u8[4096]{0}', space=vmem, size = 0x1000, scoped, tag = 'output window, operand 1, single buffered']
    #allocation5 [shape = 's32[1]{0}', space=sflag, size = 0x4, scoped, tag = 'scoped memory for tpu_custom_call.1']
    %13 = vsyncpa [#allocation5], 0
    // Predicated region
    $region2: #{tpu_custom_call.1} parent=1 // pred_check
      _
    $region3: #{tpu_custom_call.1} parent=1 // pred_check_branch
      %15 = sbr.rel (0) target = $region5
    $region4: #{tpu_custom_call.1} parent=1 // pred_region
      _
    $region5: #{tpu_custom_call.1} parent=1 // pred_fallthru
      _
    // Predicated region
    $region6: #{tpu_custom_call.1} parent=1 // pred_check
      _
    $region7: #{tpu_custom_call.1} parent=1 // pred_check_branch
      %17 = sbr.rel (0) target = $region9
    $region8: #{tpu_custom_call.1} parent=1 // pred_region
      _
    $region9: #{tpu_custom_call.1} parent=1 // pred_fallthru
      _
    // Predicated region
    $region10: #{tpu_custom_call.1} parent=1 // pred_check
      _
    $region11: #{tpu_custom_call.1} parent=1 // pred_check_branch
      %19 = sbr.rel (0) target = $region13
    $region12: #{tpu_custom_call.1} parent=1 // pred_region
      _
    $region13: #{tpu_custom_call.1} parent=1 // pred_fallthru
      _
    // Predicated region
    $region14: #{tpu_custom_call.1} parent=1 // pred_check
      _
    $region15: #{tpu_custom_call.1} parent=1 // pred_check_branch
      %21 = sbr.rel (0) target = $region17
    $region16: #{tpu_custom_call.1} parent=1 // pred_region
      _
    $region17: #{tpu_custom_call.1} parent=1 // pred_fallthru
      _
    // Predicated region
    $region18: #{tpu_custom_call.1} parent=1 // pred_check
      _
    $region19: #{tpu_custom_call.1} parent=1 // pred_check_branch
      %23 = sbr.rel (0) target = $region21
    $region20: #{tpu_custom_call.1} parent=1 // pred_region
      _
    $region21: #{tpu_custom_call.1} parent=1 // pred_fallthru
      _
    // Predicated region
    $region22: #{tpu_custom_call.1} parent=1 // pred_check
      _
    $region23: #{tpu_custom_call.1} parent=1 // pred_check_branch
      %25 = sbr.rel (0) target = $region25
    $region24: #{tpu_custom_call.1} parent=1 // pred_region
      _
    $region25: #{tpu_custom_call.1} parent=1 // pred_fallthru
      _
    %p26 = scmp.eq.s32.totalorder 0, 0
    // Predicated region
    $region26: #{tpu_custom_call.1} parent=1 // pred_check
      %p27 = pneg %p26
    $region27: #{tpu_custom_call.1} parent=1 // pred_check_branch
      %29 = sbr.rel (%p27) target = $region29
    $region28: #{tpu_custom_call.1} parent=1 // pred_region
      %v30 = vld [vmem:[%s1] sm:$0xff]
      %vm31 = vcmask 261120
      %32 = vst.msk [vmem:[#allocation3] sm:$0xff] %vm31, %v30
    $region29: #{tpu_custom_call.1} parent=1 // pred_fallthru
      _
    %v33 = vld [vmem:[%s0] sm:$0xff]
    %v34 = vld [vmem:[%s0 + $0x8] sm:$0xff]
    %v35 = vld [vmem:[%s0 + $0x10] sm:$0xff]
    %v36 = vld [vmem:[%s0 + $0x18] sm:$0xff]
    %v37 = vld [vmem:[%s0 + $0x20] sm:$0xff]
    %v38 = vld [vmem:[%s0 + $0x28] sm:$0xff]
    %v39 = vld [vmem:[%s0 + $0x30] sm:$0xff]
    %v40 = vld [vmem:[%s0 + $0x38] sm:$0xff]
    %v41 = vld [vmem:[%s2] sm:$0xff]
    %v42 = vld [vmem:[%s2 + $0x8] sm:$0xff]
    %v43 = vld [vmem:[%s4] sm:$0x1]
    %v45 = vlaneseq
    %v46 = vshrl.u32 %v45, 7
    %v47 = vsub.s32 0, %v46
    %v48 = vrot.slane %v43, %v47
    %vm50 = vcmask 130048
    %v52 = vsel %vm50, %v33, 0
    %v55 = vsel %vm50, %v34, 0
    %v58 = vsel %vm50, %v35, 0
    %v61 = vsel %vm50, %v36, 0
    %v64 = vsel %vm50, %v37, 0
    %v67 = vsel %vm50, %v38, 0
    %v70 = vsel %vm50, %v39, 0
    %v73 = vsel %vm50, %v40, 0
    %75 = vmatprep.subr.mxu0 0.0
    %76 = vmatpush1.msra.mxu0 %v41
    %77 = vmatprep.subr.mxu0 0.0
    %78 = vmatpush1.msra.mxu0 %v42
    %79 = vmatprep.subr.mxu0 0.0
    %80 = vmatpush1.msra.mxu0 0.0
    %81 = vmatprep.subr.mxu0 0.0
    %82 = vmatpush1.msra.mxu0 0.0
    %83 = vmatprep.subr.mxu0 0.0
    %84 = vmatpush1.msra.mxu0 0.0
    %85 = vmatprep.subr.mxu0 0.0
    %86 = vmatpush1.msra.mxu0 0.0
    %87 = vmatprep.subr.mxu0 0.0
    %88 = vmatpush1.msra.mxu0 0.0
    %89 = vmatprep.subr.mxu0 0.0
    %90 = vmatpush1.msra.mxu0 0.0
    %91 = vmatprep.subr.mxu0 0.0
    %92 = vmatpush1.msra.mxu0 0.0
    %93 = vmatprep.subr.mxu0 0.0
    %94 = vmatpush1.msra.mxu0 0.0
    %95 = vmatprep.subr.mxu0 0.0
    %96 = vmatpush1.msra.mxu0 0.0
    %97 = vmatprep.subr.mxu0 0.0
    %98 = vmatpush1.msra.mxu0 0.0
    %99 = vmatprep.subr.mxu0 0.0
    %100 = vmatpush1.msra.mxu0 0.0
    %101 = vmatprep.subr.mxu0 0.0
    %102 = vmatpush1.msra.mxu0 0.0
    %103 = vmatprep.subr.mxu0 0.0
    %104 = vmatpush1.msra.mxu0 0.0
    %105 = vmatprep.subr.mxu0 0.0
    %106 = vmatpush1.msra.mxu0 0.0
    %107 = vmatprep.subr.mxu0 0.0
    %108 = vmatpush1.msra.mxu0 0.0
    %109 = vmatprep.subr.mxu0 0.0
    %110 = vmatpush1.msra.mxu0 0.0
    %111 = vmatprep.subr.mxu0 0.0
    %112 = vmatpush1.msra.mxu0 0.0
    %113 = vmatprep.subr.mxu0 0.0
    %114 = vmatpush1.msra.mxu0 0.0
    %115 = vmatprep.subr.mxu0 0.0
    %116 = vmatpush1.msra.mxu0 0.0
    %117 = vmatprep.subr.mxu0 0.0
    %118 = vmatpush1.msra.mxu0 0.0
    %119 = vmatprep.subr.mxu0 0.0
    %120 = vmatpush1.msra.mxu0 0.0
    %121 = vmatprep.subr.mxu0 0.0
    %122 = vmatpush1.msra.mxu0 0.0
    %123 = vmatprep.subr.mxu0 0.0
    %124 = vmatpush1.msra.mxu0 0.0
    %125 = vmatprep.subr.mxu0 0.0
    %126 = vmatpush1.msra.mxu0 0.0
    %127 = vmatprep.subr.mxu0 0.0
    %128 = vmatpush1.msra.mxu0 0.0
    %129 = vmatprep.subr.mxu0 0.0
    %130 = vmatpush1.msra.mxu0 0.0
    %131 = vmatprep.subr.mxu0 0.0
    %132 = vmatpush1.msra.mxu0 0.0
    %133 = vmatprep.subr.mxu0 0.0
    %134 = vmatpush1.msra.mxu0 0.0
    %135 = vmatprep.subr.mxu0 0.0
    %136 = vmatpush1.msra.mxu0 0.0
    %137 = vmatprep.subr.mxu0 0.0
    %138 = vmatpush1.msra.mxu0 0.0
    %139 = vmatprep.mubr.f32.mxu0 0.0
    %140 = vmatmul.mubr.f32.gmra.mrb[0].mxu0 %v52
    %v141 = vpop.f32.mrb[0].mxu0
    %v142 = vadd.f32 %v48, %v141
    %v143 = vpop.f32.mrb[0].mxu0
    %144 = vmatprep.mubr.f32.mxu0 0.0
    %145 = vmatmul.mubr.f32.gmra.mrb[0].mxu0 %v55
    %v146 = vpop.f32.mrb[0].mxu0
    %v147 = vadd.f32 %v48, %v146
    %v148 = vpop.f32.mrb[0].mxu0
    %149 = vmatprep.mubr.f32.mxu0 0.0
    %150 = vmatmul.mubr.f32.gmra.mrb[0].mxu0 %v58
    %v151 = vpop.f32.mrb[0].mxu0
    %v152 = vadd.f32 %v48, %v151
    %v153 = vpop.f32.mrb[0].mxu0
    %154 = vmatprep.mubr.f32.mxu0 0.0
    %155 = vmatmul.mubr.f32.gmra.mrb[0].mxu0 %v61
    %v156 = vpop.f32.mrb[0].mxu0
    %v157 = vadd.f32 %v48, %v156
    %v158 = vpop.f32.mrb[0].mxu0
    %159 = vmatprep.mubr.f32.mxu0 0.0
    %160 = vmatmul.mubr.f32.gmra.mrb[0].mxu0 %v64
    %v161 = vpop.f32.mrb[0].mxu0
    %v162 = vadd.f32 %v48, %v161
    %v163 = vpop.f32.mrb[0].mxu0
    %164 = vmatprep.mubr.f32.mxu0 0.0
    %165 = vmatmul.mubr.f32.gmra.mrb[0].mxu0 %v67
    %v166 = vpop.f32.mrb[0].mxu0
    %v167 = vadd.f32 %v48, %v166
    %v168 = vpop.f32.mrb[0].mxu0
    %169 = vmatprep.mubr.f32.mxu0 0.0
    %170 = vmatmul.mubr.f32.gmra.mrb[0].mxu0 %v70
    %v171 = vpop.f32.mrb[0].mxu0
    %v172 = vadd.f32 %v48, %v171
    %v173 = vpop.f32.mrb[0].mxu0
    %174 = vmatprep.mubr.f32.mxu0 0.0
    %175 = vmatmul.mubr.f32.gmra.mrb[0].mxu0 %v73
    %v176 = vpop.f32.mrb[0].mxu0
    %v177 = vadd.f32 %v48, %v176
    %v178 = vpop.f32.mrb[0].mxu0
    %179 = vdwg.mxu0
    %vm180 = vcmask 785408
    %181 = vst.msk [vmem:[#allocation2] sm:$0xff] %vm180, %v142
    %182 = vst.msk [vmem:[#allocation2 + $0x8] sm:$0xff] %vm180, %v147
    %183 = vst.msk [vmem:[#allocation2 + $0x10] sm:$0xff] %vm180, %v152
    %184 = vst.msk [vmem:[#allocation2 + $0x18] sm:$0xff] %vm180, %v157
    %185 = vst.msk [vmem:[#allocation2 + $0x20] sm:$0xff] %vm180, %v162
    %186 = vst.msk [vmem:[#allocation2 + $0x28] sm:$0xff] %vm180, %v167
    %187 = vst.msk [vmem:[#allocation2 + $0x30] sm:$0xff] %vm180, %v172
    %188 = vst.msk [vmem:[#allocation2 + $0x38] sm:$0xff] %vm180, %v177
    %v189 = vld [vmem:[%s3] sm:$0xff]
    %v190 = vld [vmem:[%s3 + $0x8] sm:$0xff]
    %v191 = vld [vmem:[%s3 + $0x10] sm:$0xff]
    %v192 = vld [vmem:[%s3 + $0x18] sm:$0xff]
    %v193 = vld [vmem:[%s5] sm:$0x1]
    %v194 = vld [vmem:[#allocation3] sm:$0xff]
    loop: start=0, step=1, limit=8
    $region30: #{tpu_custom_call.1} parent=1 // loop_pre_header
      _
    $region31: #{tpu_custom_call.1} parent=1 // loop_header
      %s196 = sphi 0, %s200
      %p197 = scmp.ge.s32.totalorder %s196, 8
      %v201 = vphi %v194, %v319
    $region32: #{tpu_custom_call.1} parent=1 // loop_header_branch
      %199 = sbr.rel (%p197) target = $region36
    $region33: #{tpu_custom_call.1} parent=1 // loop_body
      %s202 = smul.u32 %s196, 8
      %s203 = scalar_lea.vmem [#allocation2], %s202
      %v204 = vld [vmem:[%s203] sm:$0xff]
      %vm205 = vcmask 261120
      %v207 = vsel %vm205, %v201, 0
      %209 = vmatprep.subr.mxu0 0.0
      %210 = vmatpush1.msra.mxu0 %v189
      %211 = vmatprep.subr.mxu0 0.0
      %212 = vmatpush1.msra.mxu0 %v190
      %213 = vmatprep.subr.mxu0 0.0
      %214 = vmatpush1.msra.mxu0 %v191
      %215 = vmatprep.subr.mxu0 0.0
      %216 = vmatpush1.msra.mxu0 %v192
      %217 = vmatprep.subr.mxu0 0.0
      %218 = vmatpush1.msra.mxu0 0.0
      %219 = vmatprep.subr.mxu0 0.0
      %220 = vmatpush1.msra.mxu0 0.0
      %221 = vmatprep.subr.mxu0 0.0
      %222 = vmatpush1.msra.mxu0 0.0
      %223 = vmatprep.subr.mxu0 0.0
      %224 = vmatpush1.msra.mxu0 0.0
      %225 = vmatprep.subr.mxu0 0.0
      %226 = vmatpush1.msra.mxu0 0.0
      %227 = vmatprep.subr.mxu0 0.0
      %228 = vmatpush1.msra.mxu0 0.0
      %229 = vmatprep.subr.mxu0 0.0
      %230 = vmatpush1.msra.mxu0 0.0
      %231 = vmatprep.subr.mxu0 0.0
      %232 = vmatpush1.msra.mxu0 0.0
      %233 = vmatprep.subr.mxu0 0.0
      %234 = vmatpush1.msra.mxu0 0.0
      %235 = vmatprep.subr.mxu0 0.0
      %236 = vmatpush1.msra.mxu0 0.0
      %237 = vmatprep.subr.mxu0 0.0
      %238 = vmatpush1.msra.mxu0 0.0
      %239 = vmatprep.subr.mxu0 0.0
      %240 = vmatpush1.msra.mxu0 0.0
      %241 = vmatprep.subr.mxu0 0.0
      %242 = vmatpush1.msra.mxu0 0.0
      %243 = vmatprep.subr.mxu0 0.0
      %244 = vmatpush1.msra.mxu0 0.0
      %245 = vmatprep.subr.mxu0 0.0
      %246 = vmatpush1.msra.mxu0 0.0
      %247 = vmatprep.subr.mxu0 0.0
      %248 = vmatpush1.msra.mxu0 0.0
      %249 = vmatprep.subr.mxu0 0.0
      %250 = vmatpush1.msra.mxu0 0.0
      %251 = vmatprep.subr.mxu0 0.0
      %252 = vmatpush1.msra.mxu0 0.0
      %253 = vmatprep.subr.mxu0 0.0
      %254 = vmatpush1.msra.mxu0 0.0
      %255 = vmatprep.subr.mxu0 0.0
      %256 = vmatpush1.msra.mxu0 0.0
      %257 = vmatprep.subr.mxu0 0.0
      %258 = vmatpush1.msra.mxu0 0.0
      %259 = vmatprep.subr.mxu0 0.0
      %260 = vmatpush1.msra.mxu0 0.0
      %261 = vmatprep.subr.mxu0 0.0
      %262 = vmatpush1.msra.mxu0 0.0
      %263 = vmatprep.subr.mxu0 0.0
      %264 = vmatpush1.msra.mxu0 0.0
      %265 = vmatprep.subr.mxu0 0.0
      %266 = vmatpush1.msra.mxu0 0.0
      %267 = vmatprep.subr.mxu0 0.0
      %268 = vmatpush1.msra.mxu0 0.0
      %269 = vmatprep.subr.mxu0 0.0
      %270 = vmatpush1.msra.mxu0 0.0
      %271 = vmatprep.subr.mxu0 0.0
      %272 = vmatpush1.msra.mxu0 0.0
      %273 = vmatprep.mubr.f32.mxu0 0.0
      %274 = vmatmul.mubr.f32.gmra.mrb[0].mxu0 %v207
      %v275 = vpop.f32.mrb[0].mxu0
      %v276 = vadd.f32 0.0, %v275
      %v277 = vpop.f32.mrb[0].mxu0
      %278 = vdwg.mxu0
      %v279 = vadd.f32 %v204, %v276
      %v280 = vxor.u32 %v279, 2147483648
      %v281 = vmul.f32 %v280, 1.442695
      %v282 = vpow.pop %v281
      %v283 = vadd.f32 %v282, 1.0
      %v284 = vrcp.pop %v283
      %v285 = vmul.f32 1.0, %v284
      %v287 = vlaneseq
      %v288 = vshrl.u32 %v287, 7
      %v289 = vsub.s32 0, %v288
      %v290 = vrot.slane %v193, %v289
      %291 = vrot.lane.b32.xlu0 %v290, 64
      %v292 = vpop.permute.xlu0 %291
      %v294 = vadd.f32 %v276, %v292
      %296 = vrot.lane.b32.xlu0 %v294, 64
      %v297 = vpop.permute.xlu0 %296
      %v299 = vmul.f32 %v285, %v297
      %301 = vrot.lane.b32.xlu0 %v299, 64
      %v302 = vpop.permute.xlu0 %301
      %v304 = vadd.f32 %v204, %v302
      %v305 = vtanh.pop %v304
      %v306 = vsub.f32 1.0, %v285
      %308 = vrot.lane.b32.xlu0 %v305, 96
      %v309 = vpop.permute.xlu0 %308
      %v311 = vmul.f32 %v306, %v309
      %312 = vrot.lane.b32.xlu0 %v201, 32
      %v313 = vpop.permute.xlu0 %312
      %v315 = vmul.f32 %v285, %v313
      %v316 = vadd.f32 %v311, %v315
      %318 = vrot.lane.b32.xlu0 %v316, 96
      %v319 = vpop.permute.xlu0 %318
      %s321 = scalar_lea.vmem %s6, %s202
      %322 = vst.msk [vmem:[%s321] sm:$0xff] %vm205, %v319
    $region34: #{tpu_custom_call.1} parent=1 // loop_footer
      %s200 = sadd.s32 1, %s196
    $region35: #{tpu_custom_call.1} parent=1 // loop_footer_branch
      %195 = sbr.rel target = $region31
    $region36: #{tpu_custom_call.1} parent=1 // loop_exit
      _
    %vm323 = vcmask 261120
    %324 = vst.msk [vmem:[#allocation3] sm:$0xff] %vm323, %v201
    // Predicated region
    $region37: #{tpu_custom_call.1} parent=1 // pred_check
      %p325 = pneg %p26
    $region38: #{tpu_custom_call.1} parent=1 // pred_check_branch
      %327 = sbr.rel (%p325) target = $region40
    $region39: #{tpu_custom_call.1} parent=1 // pred_region
      %328 = vst.msk [vmem:[#allocation4] sm:$0xff] %vm323, %v201
    $region40: #{tpu_custom_call.1} parent=1 // pred_fallthru
      _
    // Predicated region
    $region41: #{tpu_custom_call.1} parent=1 // pred_check
      _
    $region42: #{tpu_custom_call.1} parent=1 // pred_check_branch
      %330 = sbr.rel (0) target = $region44
    $region43: #{tpu_custom_call.1} parent=1 // pred_region
      _
    $region44: #{tpu_custom_call.1} parent=1 // pred_fallthru
      _
    // Predicated region
    $region45: #{tpu_custom_call.1} parent=1 // pred_check
      _
    $region46: #{tpu_custom_call.1} parent=1 // pred_check_branch
      %332 = sbr.rel (0) target = $region48
    $region47: #{tpu_custom_call.1} parent=1 // pred_region
      %s334 = ssub.s32 128, 128
      %335 = vsyncadd [#allocation5], %s334
      %s337 = sshll.u32 [#allocation4], 4
      %s338 = int_to_ptr.vmem [resolvable:$true] %s337
      %340 = dma.vmem_to_hbm [thread:$0]  %s338, 128, %s7, [#allocation5]
    $region48: #{tpu_custom_call.1} parent=1 // pred_fallthru
      _
    // Predicated region
    $region49: #{tpu_custom_call.1} parent=1 // pred_check
      _
    $region50: #{tpu_custom_call.1} parent=1 // pred_check_branch
      %342 = sbr.rel (0) target = $region52
    $region51: #{tpu_custom_call.1} parent=1 // pred_region
      _
    $region52: #{tpu_custom_call.1} parent=1 // pred_fallthru
      _
    // Predicated region
    $region53: #{tpu_custom_call.1} parent=1 // pred_check
      _
    $region54: #{tpu_custom_call.1} parent=1 // pred_check_branch
      %344 = sbr.rel (0) target = $region56
    $region55: #{tpu_custom_call.1} parent=1 // pred_region
      %345 = dma.done [#allocation5], 128
    $region56: #{tpu_custom_call.1} parent=1 // pred_fallthru
      _
    %346 = vsyncpa [#allocation5], 1

</llo_original>
